<compile_context>
chip_gen: v5e
topology: v5e:2x2
jax: 0.10.0
libtpu: 0.0.40
codegen_flags: <defaults>
</compile_context>

<pallas_src>
import functools

import jax
import jax.numpy as jnp
import numpy as np
from jax.experimental import pallas as pl
from jax.experimental.pallas import tpu as pltpu


# ----------------------------- small helpers -------------------------------

def _round_up(x, m):
    return ((x + m - 1) // m) * m


def _layernorm(x, w, b, eps=1e-5):
    mu = jnp.mean(x, axis=-1, keepdims=True)
    var = jnp.mean((x - mu) ** 2, axis=-1, keepdims=True)
    return (x - mu) * jax.lax.rsqrt(var + eps) * w + b


def _gelu_exact(x):
    # torch nn.GELU default: 0.5 * x * (1 + erf(x / sqrt(2)))
    return 0.5 * x * (1.0 + jax.lax.erf(x * (2.0 ** -0.5)))


# ------------------------------ Pallas kernel -------------------------------

def fused_kernel(tok_ref, pw_ref, w1_ref, w2_ref, vec_ref, o_ref, *,
                 matmul_dtype):
    """One grid step = one token tile through all L blocks + fused head.

    Refs (all VMEM):
      tok_ref : (tm, D)        token tile (cls rows live in tile 0)
      pw_ref  : (L+1, D, D)    per-layer proj weights; slot L = head W_a
      w1_ref  : (L, D, H)      per-layer MLP W1
      w2_ref  : (L, H, D)      per-layer MLP W2
      vec_ref : (L+1, 8, H)    packed per-layer vectors; slot L = head vectors
                 rows: 0 ln1_w, 1 ln1_b, 2 proj_b, 3 ln2_w, 4 ln2_b,
                       5 b1(H-wide), 6 b2, 7 pad
                 head slot rows: 0 head_ba, 1 head_wb, 2 [head_bb, 0...]
      o_ref   : (rows_cls, 1)  head output for the first rows of this tile
    """
    D = tok_ref.shape[1]
    L = w1_ref.shape[0]

    def mm(a, b):
        return jnp.dot(a.astype(matmul_dtype), b.astype(matmul_dtype),
                       preferred_element_type=jnp.float32)

    def layer(l, h):
        v = vec_ref[l]                                        # (8, H)
        # "attention" branch == output projection of norm1(x) (see header)
        a = _layernorm(h, v[0:1, :D], v[1:2, :D])
        a = mm(a, pw_ref[l]) + v[2:3, :D]
        h = h + a                                             # dropout = id
        # MLP branch: Linear -> GELU -> Linear -> GELU, residual
        m = _layernorm(h, v[3:4, :D], v[4:5, :D])
        m = _gelu_exact(mm(m, w1_ref[l]) + v[5:6, :])
        m = _gelu_exact(mm(m, w2_ref[l]) + v[6:7, :D])
        return h + m

    h = jax.lax.fori_loop(0, L, layer, tok_ref[...], unroll=True)

    # Fused head on the first rows of the tile (tile 0 holds the cls rows;
    # other tiles write well-defined junk that the wrapper discards).
    rows = o_ref.shape[0]
    hv = vec_ref[L]                                           # head vectors
    z = jnp.maximum(mm(h[:rows, :], pw_ref[L]) + hv[0:1, :D], 0.0)
    # D -> 1 projection as VPU multiply + lane reduction (no 1-col matmul).
    y = jnp.sum(z * hv[1:2, :D], axis=-1, keepdims=True) + hv[2:3, 0:1]
    o_ref[...] = jnp.maximum(y, 0.0)


# ------------------------------ pallas_call glue ----------------------------

def am_transformer(x, kp, *, tm=1024, matmul_dtype=jnp.float32):
    """x: [B, N, D] f32, kp: packed params -> [B, 1] f32."""
    B, N, D = x.shape
    M = B * (N + 1)
    Lp1, _, _ = kp["pw"].shape
    L = Lp1 - 1
    H = kp["w1"].shape[2]

    # Token slab with cls rows first; pos add rides along (tiny XLA ops).
    cls_rows = jnp.broadcast_to(
        kp["cls_token"] + kp["pos_embedding"][0, 0:1, :], (B, D))
    x_rows = (x + kp["pos_embedding"][:, 1:N + 1, :]).reshape(B * N, D)
    tokens = jnp.concatenate([cls_rows, x_rows], axis=0).astype(jnp.float32)

    rows_cls = _round_up(B, 8)
    tm = max(min(tm, _round_up(M, 8)), rows_cls)
    # v7x megacore: ensure the parallel token axis has >= 2 steps when small.
    if _round_up(M, tm) // tm < 2 and M > rows_cls:
        tm = max(rows_cls, _round_up((M + 1) // 2, 8))
    M_pad = _round_up(M, tm)
    if M_pad != M:
        tokens = jnp.pad(tokens, ((0, M_pad - M), (0, 0)))
    num_tiles = M_pad // tm

    # VMEM budget: resident weights (x2 for pipeline buffers) + token tiles
    # + MLP intermediate headroom.  Only raise the limit when needed.
    wbytes = 4 * (kp["pw"].size + kp["w1"].size + kp["w2"].size
                  + kp["vecs"].size)
    est = 2 * wbytes + 4 * tm * D * 4 + 2 * tm * H * 4 + (4 << 20)
    vmem_limit = int(est + (8 << 20)) if est > (28 << 20) else None

    kernel = functools.partial(fused_kernel, matmul_dtype=matmul_dtype)

    out = pl.pallas_call(
        kernel,
        out_shape=jax.ShapeDtypeStruct((num_tiles, rows_cls, 1), jnp.float32),
        grid=(num_tiles,),
        in_specs=[
            pl.BlockSpec((tm, D), lambda i: (i, 0)),          # token tile
            pl.BlockSpec((Lp1, D, D), lambda i: (0, 0, 0)),   # resident
            pl.BlockSpec((L, D, H), lambda i: (0, 0, 0)),     # resident
            pl.BlockSpec((L, H, D), lambda i: (0, 0, 0)),     # resident
            pl.BlockSpec((Lp1, 8, H), lambda i: (0, 0, 0)),   # resident
        ],
        out_specs=pl.BlockSpec((None, rows_cls, 1), lambda i: (i, 0, 0)),
        compiler_params=pltpu.CompilerParams(
            dimension_semantics=("parallel",),
            vmem_limit_bytes=vmem_limit),
    )(tokens, kp["pw"], kp["w1"], kp["w2"], kp["vecs"])

    return out[0, :B, :]


# ------------------------------ parameter init ------------------------------

def init_params(key, D, expansion_factor, L, seq_length):
    """Natural (torch-like) parameters."""
    H = D * expansion_factor
    keys = iter(jax.random.split(key, 2 + 10 * L + 4))

    def nrm(shape, scale):
        return (scale * jax.random.normal(next(keys), shape)).astype(jnp.float32)

    p = {
        "pos_embedding": nrm((1, seq_length, D), 1.0),   # torch.randn
        "cls_token": nrm((1, D), 1.0),                   # torch.randn
    }
    per = {k: [] for k in ("ln1_w", "ln1_b", "proj_w", "proj_b",
                           "ln2_w", "ln2_b", "w1", "b1", "w2", "b2")}
    for _ in range(L):
        per["ln1_w"].append(1.0 + nrm((D,), 0.05))
        per["ln1_b"].append(nrm((D,), 0.05))
        per["proj_w"].append(nrm((D, D), 0.02))
        per["proj_b"].append(nrm((D,), 0.01))
        per["ln2_w"].append(1.0 + nrm((D,), 0.05))
        per["ln2_b"].append(nrm((D,), 0.05))
        per["w1"].append(nrm((D, H), 0.02))
        per["b1"].append(nrm((H,), 0.01))
        per["w2"].append(nrm((H, D), 0.02))
        per["b2"].append(nrm((D,), 0.01))
    for k, v in per.items():
        p[k] = jnp.stack(v, axis=0)                      # leading L axis

    p["head_wa"] = nrm((D, D), 0.02)
    p["head_ba"] = nrm((D,), 0.01)
    p["head_wb"] = nrm((D,), 0.02)
    p["head_bb"] = nrm((1,), 0.01)
    return p


def pack_params(p):
    """Kernel-ready params: stacked matrices + packed small vectors."""
    L, D, _ = p["proj_w"].shape
    H = p["w1"].shape[2]

    pw = jnp.concatenate([p["proj_w"], p["head_wa"][None]], axis=0)  # (L+1,D,D)

    def pad_h(v):  # (L, D) -> (L, H)
        return jnp.pad(v, ((0, 0), (0, H - D)))

    vecs = jnp.stack([pad_h(p["ln1_w"]), pad_h(p["ln1_b"]), pad_h(p["proj_b"]),
                      pad_h(p["ln2_w"]), pad_h(p["ln2_b"]), p["b1"],
                      pad_h(p["b2"]), jnp.zeros((L, H), jnp.float32)],
                     axis=1)                                         # (L,8,H)

    head_row = jnp.zeros((8, H), jnp.float32)
    head_row = head_row.at[0, :D].set(p["head_ba"])
    head_row = head_row.at[1, :D].set(p["head_wb"])
    head_row = head_row.at[2, 0].set(p["head_bb"][0])
    vecs = jnp.concatenate([vecs, head_row[None]], axis=0)           # (L+1,8,H)

    return {"pos_embedding": p["pos_embedding"], "cls_token": p["cls_token"],
            "pw": pw, "w1": p["w1"], "w2": p["w2"], "vecs": vecs}


# ----------------------------- pure-JAX reference ---------------------------

def reference(x, p):
    B, N, D = x.shape
    cls = jnp.broadcast_to(p["cls_token"][None, :, :], (B, 1, D))
    h = jnp.concatenate([cls, x], axis=1) + p["pos_embedding"][:, :N + 1, :]

    def ln(v, w, b):
        mu = v.mean(-1, keepdims=True)
        var = ((v - mu) ** 2).mean(-1, keepdims=True)
        return (v - mu) / jnp.sqrt(var + 1e-5) * w + b

    gelu = lambda v: 0.5 * v * (1.0 + jax.lax.erf(v * (2.0 ** -0.5)))

    L = p["proj_w"].shape[0]
    for l in range(L):
        h = h + (ln(h, p["ln1_w"][l], p["ln1_b"][l]) @ p["proj_w"][l]
                 + p["proj_b"][l])
        m = gelu(ln(h, p["ln2_w"][l], p["ln2_b"][l]) @ p["w1"][l] + p["b1"][l])
        m = gelu(m @ p["w2"][l] + p["b2"][l])
        h = h + m
    y = jnp.maximum(h[:, 0, :] @ p["head_wa"] + p["head_ba"], 0.0)
    y = jnp.maximum(y @ p["head_wb"][:, None] + p["head_bb"], 0.0)
    return y


# ----------------------------------- main ------------------------------------

if __name__ == "__main__":
    B, N, D = 2, 8, 32
    n_heads, expansion_factor, L, seq_length = 4, 4, 2, 300

    key = jax.random.PRNGKey(0)
    kx, kparam = jax.random.split(key)
    x = jax.random.normal(kx, (B, N, D), dtype=jnp.float32)
    params = init_params(kparam, D, expansion_factor, L, seq_length)
    packed = pack_params(params)

    fwd = jax.jit(am_transformer)
    out = jax.block_until_ready(fwd(x, packed))
    assert out.shape == (B, 1), out.shape

    ref = reference(x, params)
    np.testing.assert_allclose(np.asarray(out), np.asarray(ref),
                               atol=1e-2, rtol=1e-2)
    print("KERNEL_OK")
</pallas_src>

<mosaic_0001>
module attributes {stable_mosaic.version = 11 : i64} {
  func.func @fused_kernel(%arg0: i32, %arg1: memref<16x32xf32, #tpu.memory_space<vmem>>, %arg2: memref<3x32x32xf32, #tpu.memory_space<vmem>>, %arg3: memref<2x32x128xf32, #tpu.memory_space<vmem>>, %arg4: memref<2x128x32xf32, #tpu.memory_space<vmem>>, %arg5: memref<3x8x128xf32, #tpu.memory_space<vmem>>, %arg6: memref<1x8x1xf32, #tpu.memory_space<vmem>>) attributes {dimension_semantics = [#tpu.dimension_semantics<parallel>], iteration_bounds = array<i64: 2>, scalar_prefetch = 0 : i64, scratch_operands = 0 : i64, tpu.core_type = #tpu.core_type<tc>, window_params = [{transform_indices = @transform_0, window_bounds = array<i64: 16, 32>}, {pipeline_mode = #tpu.pipeline_mode<synchronous>, transform_indices = @transform_1, window_bounds = array<i64: 3, 32, 32>}, {pipeline_mode = #tpu.pipeline_mode<synchronous>, transform_indices = @transform_2, window_bounds = array<i64: 2, 32, 128>}, {pipeline_mode = #tpu.pipeline_mode<synchronous>, transform_indices = @transform_3, window_bounds = array<i64: 2, 128, 32>}, {pipeline_mode = #tpu.pipeline_mode<synchronous>, transform_indices = @transform_4, window_bounds = array<i64: 3, 8, 128>}, {transform_indices = @transform_5, window_bounds = array<i64: 1, 8, 1>}]} {
    %c0 = arith.constant 0 : index
    %c0_0 = arith.constant 0 : index
    %0 = vector.load %arg1[%c0, %c0_0] : memref<16x32xf32, #tpu.memory_space<vmem>>, vector<16x32xf32>
    %c0_i32 = arith.constant 0 : i32
    %1 = arith.index_cast %c0_i32 : i32 to index
    %c0_1 = arith.constant 0 : index
    %c0_2 = arith.constant 0 : index
    %2 = vector.load %arg5[%1, %c0_1, %c0_2] : memref<3x8x128xf32, #tpu.memory_space<vmem>>, vector<1x8x128xf32>
    %3 = vector.shape_cast %2 : vector<1x8x128xf32> to vector<8x128xf32>
    %4 = vector.extract_strided_slice %3 {offsets = [0, 0], sizes = [1, 32], strides = [1, 1]} : vector<8x128xf32> to vector<1x32xf32>
    %5 = vector.extract_strided_slice %3 {offsets = [1, 0], sizes = [1, 32], strides = [1, 1]} : vector<8x128xf32> to vector<1x32xf32>
    %cst = arith.constant dense<0.000000e+00> : vector<16xf32>
    %6 = vector.multi_reduction <add>, %0, %cst [1] : vector<16x32xf32> to vector<16xf32>
    %7 = vector.shape_cast %6 : vector<16xf32> to vector<16x1xf32>
    %cst_3 = arith.constant 3.200000e+01 : f32
    %8 = vector.broadcast %cst_3 : f32 to vector<16x1xf32>
    %9 = arith.divf %7, %8 : vector<16x1xf32>
    %10 = vector.broadcast %9 : vector<16x1xf32> to vector<16x32xf32>
    %11 = arith.subf %0, %10 : vector<16x32xf32>
    %12 = arith.mulf %11, %11 : vector<16x32xf32>
    %cst_4 = arith.constant dense<0.000000e+00> : vector<16xf32>
    %13 = vector.multi_reduction <add>, %12, %cst_4 [1] : vector<16x32xf32> to vector<16xf32>
    %14 = vector.shape_cast %13 : vector<16xf32> to vector<16x1xf32>
    %cst_5 = arith.constant 3.200000e+01 : f32
    %15 = vector.broadcast %cst_5 : f32 to vector<16x1xf32>
    %16 = arith.divf %14, %15 : vector<16x1xf32>
    %17 = vector.broadcast %9 : vector<16x1xf32> to vector<16x32xf32>
    %18 = arith.subf %0, %17 : vector<16x32xf32>
    %cst_6 = arith.constant 9.99999974E-6 : f32
    %19 = vector.broadcast %cst_6 : f32 to vector<16x1xf32>
    %20 = arith.addf %16, %19 : vector<16x1xf32>
    %21 = math.rsqrt %20 : vector<16x1xf32>
    %22 = vector.broadcast %21 : vector<16x1xf32> to vector<16x32xf32>
    %23 = arith.mulf %18, %22 : vector<16x32xf32>
    %24 = vector.broadcast %4 : vector<1x32xf32> to vector<16x32xf32>
    %25 = arith.mulf %23, %24 : vector<16x32xf32>
    %26 = vector.broadcast %5 : vector<1x32xf32> to vector<16x32xf32>
    %27 = arith.addf %25, %26 : vector<16x32xf32>
    %28 = arith.index_cast %c0_i32 : i32 to index
    %c0_7 = arith.constant 0 : index
    %c0_8 = arith.constant 0 : index
    %29 = vector.load %arg2[%28, %c0_7, %c0_8] : memref<3x32x32xf32, #tpu.memory_space<vmem>>, vector<1x32x32xf32>
    %30 = vector.shape_cast %29 : vector<1x32x32xf32> to vector<32x32xf32>
    %cst_9 = arith.constant dense<0.000000e+00> : vector<16x32xf32>
    %31 = tpu.matmul %27, %30, %cst_9 {dimension_numbers = #tpu.dot_dimension_numbers<[1], [0], [0], [1], [0, 0, 1, 1], [], []>} : vector<16x32xf32>, vector<32x32xf32>, vector<16x32xf32> -> vector<16x32xf32>
    %32 = vector.extract_strided_slice %3 {offsets = [2, 0], sizes = [1, 32], strides = [1, 1]} : vector<8x128xf32> to vector<1x32xf32>
    %33 = vector.broadcast %32 : vector<1x32xf32> to vector<16x32xf32>
    %34 = arith.addf %31, %33 : vector<16x32xf32>
    %35 = arith.addf %0, %34 : vector<16x32xf32>
    %36 = vector.extract_strided_slice %3 {offsets = [3, 0], sizes = [1, 32], strides = [1, 1]} : vector<8x128xf32> to vector<1x32xf32>
    %37 = vector.extract_strided_slice %3 {offsets = [4, 0], sizes = [1, 32], strides = [1, 1]} : vector<8x128xf32> to vector<1x32xf32>
    %cst_10 = arith.constant dense<0.000000e+00> : vector<16xf32>
    %38 = vector.multi_reduction <add>, %35, %cst_10 [1] : vector<16x32xf32> to vector<16xf32>
    %39 = vector.shape_cast %38 : vector<16xf32> to vector<16x1xf32>
    %cst_11 = arith.constant 3.200000e+01 : f32
    %40 = vector.broadcast %cst_11 : f32 to vector<16x1xf32>
    %41 = arith.divf %39, %40 : vector<16x1xf32>
    %42 = vector.broadcast %41 : vector<16x1xf32> to vector<16x32xf32>
    %43 = arith.subf %35, %42 : vector<16x32xf32>
    %44 = arith.mulf %43, %43 : vector<16x32xf32>
    %cst_12 = arith.constant dense<0.000000e+00> : vector<16xf32>
    %45 = vector.multi_reduction <add>, %44, %cst_12 [1] : vector<16x32xf32> to vector<16xf32>
    %46 = vector.shape_cast %45 : vector<16xf32> to vector<16x1xf32>
    %cst_13 = arith.constant 3.200000e+01 : f32
    %47 = vector.broadcast %cst_13 : f32 to vector<16x1xf32>
    %48 = arith.divf %46, %47 : vector<16x1xf32>
    %49 = vector.broadcast %41 : vector<16x1xf32> to vector<16x32xf32>
    %50 = arith.subf %35, %49 : vector<16x32xf32>
    %cst_14 = arith.constant 9.99999974E-6 : f32
    %51 = vector.broadcast %cst_14 : f32 to vector<16x1xf32>
    %52 = arith.addf %48, %51 : vector<16x1xf32>
    %53 = math.rsqrt %52 : vector<16x1xf32>
    %54 = vector.broadcast %53 : vector<16x1xf32> to vector<16x32xf32>
    %55 = arith.mulf %50, %54 : vector<16x32xf32>
    %56 = vector.broadcast %36 : vector<1x32xf32> to vector<16x32xf32>
    %57 = arith.mulf %55, %56 : vector<16x32xf32>
    %58 = vector.broadcast %37 : vector<1x32xf32> to vector<16x32xf32>
    %59 = arith.addf %57, %58 : vector<16x32xf32>
    %60 = arith.index_cast %c0_i32 : i32 to index
    %c0_15 = arith.constant 0 : index
    %c0_16 = arith.constant 0 : index
    %61 = vector.load %arg3[%60, %c0_15, %c0_16] : memref<2x32x128xf32, #tpu.memory_space<vmem>>, vector<1x32x128xf32>
    %62 = vector.shape_cast %61 : vector<1x32x128xf32> to vector<32x128xf32>
    %cst_17 = arith.constant dense<0.000000e+00> : vector<16x128xf32>
    %63 = tpu.matmul %59, %62, %cst_17 {dimension_numbers = #tpu.dot_dimension_numbers<[1], [0], [0], [1], [0, 0, 1, 1], [], []>} : vector<16x32xf32>, vector<32x128xf32>, vector<16x128xf32> -> vector<16x128xf32>
    %64 = vector.extract_strided_slice %3 {offsets = [5, 0], sizes = [1, 128], strides = [1, 1]} : vector<8x128xf32> to vector<1x128xf32>
    %65 = vector.broadcast %64 : vector<1x128xf32> to vector<16x128xf32>
    %66 = arith.addf %63, %65 : vector<16x128xf32>
    %cst_18 = arith.constant 5.000000e-01 : f32
    %67 = vector.broadcast %cst_18 : f32 to vector<16x128xf32>
    %68 = arith.mulf %67, %66 : vector<16x128xf32>
    %cst_19 = arith.constant 0.707106769 : f32
    %69 = vector.broadcast %cst_19 : f32 to vector<16x128xf32>
    %70 = arith.mulf %66, %69 : vector<16x128xf32>
    %71 = math.erf %70 : vector<16x128xf32>
    %cst_20 = arith.constant 1.000000e+00 : f32
    %72 = vector.broadcast %cst_20 : f32 to vector<16x128xf32>
    %73 = arith.addf %72, %71 : vector<16x128xf32>
    %74 = arith.mulf %68, %73 : vector<16x128xf32>
    %75 = arith.index_cast %c0_i32 : i32 to index
    %c0_21 = arith.constant 0 : index
    %c0_22 = arith.constant 0 : index
    %76 = vector.load %arg4[%75, %c0_21, %c0_22] : memref<2x128x32xf32, #tpu.memory_space<vmem>>, vector<1x128x32xf32>
    %77 = vector.shape_cast %76 : vector<1x128x32xf32> to vector<128x32xf32>
    %cst_23 = arith.constant dense<0.000000e+00> : vector<16x32xf32>
    %78 = tpu.matmul %74, %77, %cst_23 {dimension_numbers = #tpu.dot_dimension_numbers<[1], [0], [0], [1], [0, 0, 1, 1], [], []>} : vector<16x128xf32>, vector<128x32xf32>, vector<16x32xf32> -> vector<16x32xf32>
    %79 = vector.extract_strided_slice %3 {offsets = [6, 0], sizes = [1, 32], strides = [1, 1]} : vector<8x128xf32> to vector<1x32xf32>
    %80 = vector.broadcast %79 : vector<1x32xf32> to vector<16x32xf32>
    %81 = arith.addf %78, %80 : vector<16x32xf32>
    %cst_24 = arith.constant 5.000000e-01 : f32
    %82 = vector.broadcast %cst_24 : f32 to vector<16x32xf32>
    %83 = arith.mulf %82, %81 : vector<16x32xf32>
    %cst_25 = arith.constant 0.707106769 : f32
    %84 = vector.broadcast %cst_25 : f32 to vector<16x32xf32>
    %85 = arith.mulf %81, %84 : vector<16x32xf32>
    %86 = math.erf %85 : vector<16x32xf32>
    %cst_26 = arith.constant 1.000000e+00 : f32
    %87 = vector.broadcast %cst_26 : f32 to vector<16x32xf32>
    %88 = arith.addf %87, %86 : vector<16x32xf32>
    %89 = arith.mulf %83, %88 : vector<16x32xf32>
    %90 = arith.addf %35, %89 : vector<16x32xf32>
    %c1_i32 = arith.constant 1 : i32
    %91 = arith.index_cast %c1_i32 : i32 to index
    %c0_27 = arith.constant 0 : index
    %c0_28 = arith.constant 0 : index
    %92 = vector.load %arg5[%91, %c0_27, %c0_28] : memref<3x8x128xf32, #tpu.memory_space<vmem>>, vector<1x8x128xf32>
    %93 = vector.shape_cast %92 : vector<1x8x128xf32> to vector<8x128xf32>
    %94 = vector.extract_strided_slice %93 {offsets = [0, 0], sizes = [1, 32], strides = [1, 1]} : vector<8x128xf32> to vector<1x32xf32>
    %95 = vector.extract_strided_slice %93 {offsets = [1, 0], sizes = [1, 32], strides = [1, 1]} : vector<8x128xf32> to vector<1x32xf32>
    %cst_29 = arith.constant dense<0.000000e+00> : vector<16xf32>
    %96 = vector.multi_reduction <add>, %90, %cst_29 [1] : vector<16x32xf32> to vector<16xf32>
    %97 = vector.shape_cast %96 : vector<16xf32> to vector<16x1xf32>
    %cst_30 = arith.constant 3.200000e+01 : f32
    %98 = vector.broadcast %cst_30 : f32 to vector<16x1xf32>
    %99 = arith.divf %97, %98 : vector<16x1xf32>
    %100 = vector.broadcast %99 : vector<16x1xf32> to vector<16x32xf32>
    %101 = arith.subf %90, %100 : vector<16x32xf32>
    %102 = arith.mulf %101, %101 : vector<16x32xf32>
    %cst_31 = arith.constant dense<0.000000e+00> : vector<16xf32>
    %103 = vector.multi_reduction <add>, %102, %cst_31 [1] : vector<16x32xf32> to vector<16xf32>
    %104 = vector.shape_cast %103 : vector<16xf32> to vector<16x1xf32>
    %cst_32 = arith.constant 3.200000e+01 : f32
    %105 = vector.broadcast %cst_32 : f32 to vector<16x1xf32>
    %106 = arith.divf %104, %105 : vector<16x1xf32>
    %107 = vector.broadcast %99 : vector<16x1xf32> to vector<16x32xf32>
    %108 = arith.subf %90, %107 : vector<16x32xf32>
    %cst_33 = arith.constant 9.99999974E-6 : f32
    %109 = vector.broadcast %cst_33 : f32 to vector<16x1xf32>
    %110 = arith.addf %106, %109 : vector<16x1xf32>
    %111 = math.rsqrt %110 : vector<16x1xf32>
    %112 = vector.broadcast %111 : vector<16x1xf32> to vector<16x32xf32>
    %113 = arith.mulf %108, %112 : vector<16x32xf32>
    %114 = vector.broadcast %94 : vector<1x32xf32> to vector<16x32xf32>
    %115 = arith.mulf %113, %114 : vector<16x32xf32>
    %116 = vector.broadcast %95 : vector<1x32xf32> to vector<16x32xf32>
    %117 = arith.addf %115, %116 : vector<16x32xf32>
    %118 = arith.index_cast %c1_i32 : i32 to index
    %c0_34 = arith.constant 0 : index
    %c0_35 = arith.constant 0 : index
    %119 = vector.load %arg2[%118, %c0_34, %c0_35] : memref<3x32x32xf32, #tpu.memory_space<vmem>>, vector<1x32x32xf32>
    %120 = vector.shape_cast %119 : vector<1x32x32xf32> to vector<32x32xf32>
    %cst_36 = arith.constant dense<0.000000e+00> : vector<16x32xf32>
    %121 = tpu.matmul %117, %120, %cst_36 {dimension_numbers = #tpu.dot_dimension_numbers<[1], [0], [0], [1], [0, 0, 1, 1], [], []>} : vector<16x32xf32>, vector<32x32xf32>, vector<16x32xf32> -> vector<16x32xf32>
    %122 = vector.extract_strided_slice %93 {offsets = [2, 0], sizes = [1, 32], strides = [1, 1]} : vector<8x128xf32> to vector<1x32xf32>
    %123 = vector.broadcast %122 : vector<1x32xf32> to vector<16x32xf32>
    %124 = arith.addf %121, %123 : vector<16x32xf32>
    %125 = arith.addf %90, %124 : vector<16x32xf32>
    %126 = vector.extract_strided_slice %93 {offsets = [3, 0], sizes = [1, 32], strides = [1, 1]} : vector<8x128xf32> to vector<1x32xf32>
    %127 = vector.extract_strided_slice %93 {offsets = [4, 0], sizes = [1, 32], strides = [1, 1]} : vector<8x128xf32> to vector<1x32xf32>
    %cst_37 = arith.constant dense<0.000000e+00> : vector<16xf32>
    %128 = vector.multi_reduction <add>, %125, %cst_37 [1] : vector<16x32xf32> to vector<16xf32>
    %129 = vector.shape_cast %128 : vector<16xf32> to vector<16x1xf32>
    %cst_38 = arith.constant 3.200000e+01 : f32
    %130 = vector.broadcast %cst_38 : f32 to vector<16x1xf32>
    %131 = arith.divf %129, %130 : vector<16x1xf32>
    %132 = vector.broadcast %131 : vector<16x1xf32> to vector<16x32xf32>
    %133 = arith.subf %125, %132 : vector<16x32xf32>
    %134 = arith.mulf %133, %133 : vector<16x32xf32>
    %cst_39 = arith.constant dense<0.000000e+00> : vector<16xf32>
    %135 = vector.multi_reduction <add>, %134, %cst_39 [1] : vector<16x32xf32> to vector<16xf32>
    %136 = vector.shape_cast %135 : vector<16xf32> to vector<16x1xf32>
    %cst_40 = arith.constant 3.200000e+01 : f32
    %137 = vector.broadcast %cst_40 : f32 to vector<16x1xf32>
    %138 = arith.divf %136, %137 : vector<16x1xf32>
    %139 = vector.broadcast %131 : vector<16x1xf32> to vector<16x32xf32>
    %140 = arith.subf %125, %139 : vector<16x32xf32>
    %cst_41 = arith.constant 9.99999974E-6 : f32
    %141 = vector.broadcast %cst_41 : f32 to vector<16x1xf32>
    %142 = arith.addf %138, %141 : vector<16x1xf32>
    %143 = math.rsqrt %142 : vector<16x1xf32>
    %144 = vector.broadcast %143 : vector<16x1xf32> to vector<16x32xf32>
    %145 = arith.mulf %140, %144 : vector<16x32xf32>
    %146 = vector.broadcast %126 : vector<1x32xf32> to vector<16x32xf32>
    %147 = arith.mulf %145, %146 : vector<16x32xf32>
    %148 = vector.broadcast %127 : vector<1x32xf32> to vector<16x32xf32>
    %149 = arith.addf %147, %148 : vector<16x32xf32>
    %150 = arith.index_cast %c1_i32 : i32 to index
    %c0_42 = arith.constant 0 : index
    %c0_43 = arith.constant 0 : index
    %151 = vector.load %arg3[%150, %c0_42, %c0_43] : memref<2x32x128xf32, #tpu.memory_space<vmem>>, vector<1x32x128xf32>
    %152 = vector.shape_cast %151 : vector<1x32x128xf32> to vector<32x128xf32>
    %cst_44 = arith.constant dense<0.000000e+00> : vector<16x128xf32>
    %153 = tpu.matmul %149, %152, %cst_44 {dimension_numbers = #tpu.dot_dimension_numbers<[1], [0], [0], [1], [0, 0, 1, 1], [], []>} : vector<16x32xf32>, vector<32x128xf32>, vector<16x128xf32> -> vector<16x128xf32>
    %154 = vector.extract_strided_slice %93 {offsets = [5, 0], sizes = [1, 128], strides = [1, 1]} : vector<8x128xf32> to vector<1x128xf32>
    %155 = vector.broadcast %154 : vector<1x128xf32> to vector<16x128xf32>
    %156 = arith.addf %153, %155 : vector<16x128xf32>
    %cst_45 = arith.constant 5.000000e-01 : f32
    %157 = vector.broadcast %cst_45 : f32 to vector<16x128xf32>
    %158 = arith.mulf %157, %156 : vector<16x128xf32>
    %cst_46 = arith.constant 0.707106769 : f32
    %159 = vector.broadcast %cst_46 : f32 to vector<16x128xf32>
    %160 = arith.mulf %156, %159 : vector<16x128xf32>
    %161 = math.erf %160 : vector<16x128xf32>
    %cst_47 = arith.constant 1.000000e+00 : f32
    %162 = vector.broadcast %cst_47 : f32 to vector<16x128xf32>
    %163 = arith.addf %162, %161 : vector<16x128xf32>
    %164 = arith.mulf %158, %163 : vector<16x128xf32>
    %165 = arith.index_cast %c1_i32 : i32 to index
    %c0_48 = arith.constant 0 : index
    %c0_49 = arith.constant 0 : index
    %166 = vector.load %arg4[%165, %c0_48, %c0_49] : memref<2x128x32xf32, #tpu.memory_space<vmem>>, vector<1x128x32xf32>
    %167 = vector.shape_cast %166 : vector<1x128x32xf32> to vector<128x32xf32>
    %cst_50 = arith.constant dense<0.000000e+00> : vector<16x32xf32>
    %168 = tpu.matmul %164, %167, %cst_50 {dimension_numbers = #tpu.dot_dimension_numbers<[1], [0], [0], [1], [0, 0, 1, 1], [], []>} : vector<16x128xf32>, vector<128x32xf32>, vector<16x32xf32> -> vector<16x32xf32>
    %169 = vector.extract_strided_slice %93 {offsets = [6, 0], sizes = [1, 32], strides = [1, 1]} : vector<8x128xf32> to vector<1x32xf32>
    %170 = vector.broadcast %169 : vector<1x32xf32> to vector<16x32xf32>
    %171 = arith.addf %168, %170 : vector<16x32xf32>
    %cst_51 = arith.constant 5.000000e-01 : f32
    %172 = vector.broadcast %cst_51 : f32 to vector<16x32xf32>
    %173 = arith.mulf %172, %171 : vector<16x32xf32>
    %cst_52 = arith.constant 0.707106769 : f32
    %174 = vector.broadcast %cst_52 : f32 to vector<16x32xf32>
    %175 = arith.mulf %171, %174 : vector<16x32xf32>
    %176 = math.erf %175 : vector<16x32xf32>
    %cst_53 = arith.constant 1.000000e+00 : f32
    %177 = vector.broadcast %cst_53 : f32 to vector<16x32xf32>
    %178 = arith.addf %177, %176 : vector<16x32xf32>
    %179 = arith.mulf %173, %178 : vector<16x32xf32>
    %180 = arith.addf %125, %179 : vector<16x32xf32>
    %c2_i32 = arith.constant 2 : i32
    %c2 = arith.constant 2 : index
    %c0_54 = arith.constant 0 : index
    %c0_55 = arith.constant 0 : index
    %181 = vector.load %arg5[%c2, %c0_54, %c0_55] : memref<3x8x128xf32, #tpu.memory_space<vmem>>, vector<1x8x128xf32>
    %182 = vector.shape_cast %181 : vector<1x8x128xf32> to vector<8x128xf32>
    %183 = vector.extract_strided_slice %180 {offsets = [0, 0], sizes = [8, 32], strides = [1, 1]} : vector<16x32xf32> to vector<8x32xf32>
    %c2_56 = arith.constant 2 : index
    %c0_57 = arith.constant 0 : index
    %c0_58 = arith.constant 0 : index
    %184 = vector.load %arg2[%c2_56, %c0_57, %c0_58] : memref<3x32x32xf32, #tpu.memory_space<vmem>>, vector<1x32x32xf32>
    %185 = vector.shape_cast %184 : vector<1x32x32xf32> to vector<32x32xf32>
    %cst_59 = arith.constant dense<0.000000e+00> : vector<8x32xf32>
    %186 = tpu.matmul %183, %185, %cst_59 {dimension_numbers = #tpu.dot_dimension_numbers<[1], [0], [0], [1], [0, 0, 1, 1], [], []>} : vector<8x32xf32>, vector<32x32xf32>, vector<8x32xf32> -> vector<8x32xf32>
    %187 = vector.extract_strided_slice %182 {offsets = [0, 0], sizes = [1, 32], strides = [1, 1]} : vector<8x128xf32> to vector<1x32xf32>
    %188 = vector.broadcast %187 : vector<1x32xf32> to vector<8x32xf32>
    %189 = arith.addf %186, %188 : vector<8x32xf32>
    %cst_60 = arith.constant 0.000000e+00 : f32
    %190 = vector.broadcast %cst_60 : f32 to vector<8x32xf32>
    %191 = arith.maximumf %189, %190 : vector<8x32xf32>
    %192 = vector.extract_strided_slice %182 {offsets = [1, 0], sizes = [1, 32], strides = [1, 1]} : vector<8x128xf32> to vector<1x32xf32>
    %193 = vector.broadcast %192 : vector<1x32xf32> to vector<8x32xf32>
    %194 = arith.mulf %191, %193 : vector<8x32xf32>
    %cst_61 = arith.constant dense<0.000000e+00> : vector<8xf32>
    %195 = vector.multi_reduction <add>, %194, %cst_61 [1] : vector<8x32xf32> to vector<8xf32>
    %196 = vector.shape_cast %195 : vector<8xf32> to vector<8x1xf32>
    %197 = vector.extract_strided_slice %182 {offsets = [2, 0], sizes = [1, 1], strides = [1, 1]} : vector<8x128xf32> to vector<1x1xf32>
    %198 = vector.broadcast %197 : vector<1x1xf32> to vector<8x1xf32>
    %199 = arith.addf %196, %198 : vector<8x1xf32>
    %cst_62 = arith.constant 0.000000e+00 : f32
    %200 = vector.broadcast %cst_62 : f32 to vector<8x1xf32>
    %201 = arith.maximumf %199, %200 : vector<8x1xf32>
    %c0_63 = arith.constant 0 : index
    %c0_64 = arith.constant 0 : index
    %c0_65 = arith.constant 0 : index
    %202 = vector.load %arg6[%c0_63, %c0_64, %c0_65] : memref<1x8x1xf32, #tpu.memory_space<vmem>>, vector<1x8x1xf32>
    %203 = vector.shape_cast %202 : vector<1x8x1xf32> to vector<8x1xf32>
    %204 = vector.shape_cast %201 : vector<8x1xf32> to vector<1x8x1xf32>
    tpu.vector_store %arg6[%c0_63, %c0_64, %c0_65], %204 {strides = array<i32>} : memref<1x8x1xf32, #tpu.memory_space<vmem>>, vector<1x8x1xf32>,
    return
  }
  func.func @transform_0(%arg0: i32) -> (i32, i32) {
    %c0_i32 = arith.constant 0 : i32
    %c0_i32_0 = arith.constant 0 : i32
    return %arg0, %c0_i32 : i32, i32
  }
  func.func @transform_1(%arg0: i32) -> (i32, i32, i32) {
    %c0_i32 = arith.constant 0 : i32
    %c0_i32_0 = arith.constant 0 : i32
    %c0_i32_1 = arith.constant 0 : i32
    %c0_i32_2 = arith.constant 0 : i32
    return %c0_i32, %c0_i32_0, %c0_i32_1 : i32, i32, i32
  }
  func.func @transform_2(%arg0: i32) -> (i32, i32, i32) {
    %c0_i32 = arith.constant 0 : i32
    %c0_i32_0 = arith.constant 0 : i32
    %c0_i32_1 = arith.constant 0 : i32
    %c0_i32_2 = arith.constant 0 : i32
    return %c0_i32, %c0_i32_0, %c0_i32_1 : i32, i32, i32
  }
  func.func @transform_3(%arg0: i32) -> (i32, i32, i32) {
    %c0_i32 = arith.constant 0 : i32
    %c0_i32_0 = arith.constant 0 : i32
    %c0_i32_1 = arith.constant 0 : i32
    %c0_i32_2 = arith.constant 0 : i32
    return %c0_i32, %c0_i32_0, %c0_i32_1 : i32, i32, i32
  }
  func.func @transform_4(%arg0: i32) -> (i32, i32, i32) {
    %c0_i32 = arith.constant 0 : i32
    %c0_i32_0 = arith.constant 0 : i32
    %c0_i32_1 = arith.constant 0 : i32
    %c0_i32_2 = arith.constant 0 : i32
    return %c0_i32, %c0_i32_0, %c0_i32_1 : i32, i32, i32
  }
  func.func @transform_5(%arg0: i32) -> (i32, i32, i32) {
    %c0_i32 = arith.constant 0 : i32
    %c0_i32_0 = arith.constant 0 : i32
    %c0_i32_1 = arith.constant 0 : i32
    return %arg0, %c0_i32, %c0_i32_0 : i32, i32, i32
  }
}

</mosaic_0001>

<llo_original>
// kernel: am_transformer.1
$region0: #{am_transformer.1}
  #allocation0 [shape = 'u32[]', space=smem, size = 0x4, offset = 0x4, fixed_abs, tag = 'smem constant byte address 0x4 - core index']
  #allocation1 [shape = 'u32[72,128]{1,0:T(1,128)}', space=vmem, size = 0x9000, scoped, tag = 'internal scratch']
  %s0 = inlined_call_operand.vmem [shape: f32[32,32], index: 0, kind: input, shape index: {}]
  %s1 = inlined_call_operand.vmem [shape: f32[3,32,32], index: 1, kind: input, shape index: {}]
  %s2 = inlined_call_operand.vmem [shape: f32[2,32,128], index: 2, kind: input, shape index: {}]
  %s3 = inlined_call_operand.vmem [shape: f32[2,128,32], index: 3, kind: input, shape index: {}]
  %s4 = inlined_call_operand.vmem [shape: f32[3,8,128], index: 4, kind: input, shape index: {}]
  %s5 = inlined_call_operand.vmem [shape: f32[2,8,1], index: 5, kind: output, shape index: {}]
  %s6 = sld [smem:[#allocation0]]
  $region53: #{am_transformer.1} parent=0
    _
  %s8 = ssub.s32 1, %s6
  %s9 = scalar_select 0, %s8, %s6
  loop: start=0, step=1, limit=4
  $region2: #{am_transformer.1} parent=0 // loop_pre_header
    _
  $region3: #{am_transformer.1} parent=0 // loop_header
    %s11 = sphi 0, %s15
    %p12 = scmp.ge.s32.totalorder %s11, 4
    %s21 = sphi 0, %s23
    %s24 = sphi 0, %s21
    %s25 = sphi 0, %s24
    %s41 = sphi 0, %s25
    %s45 = sphi 0, %s45
    %s47 = sphi 0, %s45
    %s48 = sphi 0, %s47
    %s62 = sphi 0, %s48
    %s66 = sphi 0, %s66
    %s68 = sphi 0, %s66
    %s69 = sphi 0, %s68
    %s83 = sphi 0, %s69
    %s87 = sphi 0, %s87
    %s89 = sphi 0, %s87
    %s90 = sphi 0, %s89
    %s104 = sphi 0, %s90
    %s108 = sphi 0, %s108
    %s110 = sphi 0, %s108
    %s111 = sphi 0, %s110
    %s125 = sphi 0, %s111
    %s131 = sphi 0, %s133
    %s134 = sphi 0, %s131
    %s135 = sphi 0, %s134
    %s151 = sphi 0, %s135
  $region4: #{am_transformer.1} parent=0 // loop_header_branch
    %14 = sbr.rel (%p12) target = $region8
  $region5: #{am_transformer.1} parent=0 // loop_body
    %s16 = ssub.s32 %s11, 1
    %s17 = ssub.s32 %s11, 2
    %s18 = sadd.s32 %s11, 1
    %s19 = ssub.s32 %s11, %s18
    %p20 = scmp.eq.s32.totalorder %s19, 0
    %s22 = sadd.s32 %s21, 1
    %s23 = scalar_select %p20, %s21, %s22
    %p26 = pneg %p20
    %p27 = scmp.eq.s32.totalorder %s11, 1
    %p28 = por %p26, %p27
    %p29 = scmp.ne.s32.totalorder %s21, %s24
    %p30 = scmp.eq.s32.totalorder %s11, 0
    %p31 = por %p29, %p30
    %p32 = scmp.ne.s32.totalorder %s21, %s24
    %p33 = scmp.eq.s32.totalorder %s16, 1
    %p34 = por %p32, %p33
    %p35 = scmp.ne.s32.totalorder %s24, %s25
    %p36 = scmp.eq.s32.totalorder %s16, 0
    %p37 = por %p35, %p36
    %p38 = scmp.ne.s32.totalorder %s24, %s25
    %p39 = scmp.eq.s32.totalorder %s17, 1
    %p40 = por %p38, %p39
    %p42 = scmp.ne.s32.totalorder %s25, %s41
    %p43 = scmp.eq.s32.totalorder %s17, 0
    %p44 = por %p42, %p43
    %s46 = sadd.s32 %s45, 1
    %p49 = scmp.eq.s32.totalorder %s11, 1
    %p50 = scmp.ne.s32.totalorder %s45, %s47
    %p51 = scmp.eq.s32.totalorder %s11, 0
    %p52 = por %p50, %p51
    %p53 = scmp.ne.s32.totalorder %s45, %s47
    %p54 = scmp.eq.s32.totalorder %s16, 1
    %p55 = por %p53, %p54
    %p56 = scmp.ne.s32.totalorder %s47, %s48
    %p57 = scmp.eq.s32.totalorder %s16, 0
    %p58 = por %p56, %p57
    %p59 = scmp.ne.s32.totalorder %s47, %s48
    %p60 = scmp.eq.s32.totalorder %s17, 1
    %p61 = por %p59, %p60
    %p63 = scmp.ne.s32.totalorder %s48, %s62
    %p64 = scmp.eq.s32.totalorder %s17, 0
    %p65 = por %p63, %p64
    %s67 = sadd.s32 %s66, 1
    %p70 = scmp.eq.s32.totalorder %s11, 1
    %p71 = scmp.ne.s32.totalorder %s66, %s68
    %p72 = scmp.eq.s32.totalorder %s11, 0
    %p73 = por %p71, %p72
    %p74 = scmp.ne.s32.totalorder %s66, %s68
    %p75 = scmp.eq.s32.totalorder %s16, 1
    %p76 = por %p74, %p75
    %p77 = scmp.ne.s32.totalorder %s68, %s69
    %p78 = scmp.eq.s32.totalorder %s16, 0
    %p79 = por %p77, %p78
    %p80 = scmp.ne.s32.totalorder %s68, %s69
    %p81 = scmp.eq.s32.totalorder %s17, 1
    %p82 = por %p80, %p81
    %p84 = scmp.ne.s32.totalorder %s69, %s83
    %p85 = scmp.eq.s32.totalorder %s17, 0
    %p86 = por %p84, %p85
    %s88 = sadd.s32 %s87, 1
    %p91 = scmp.eq.s32.totalorder %s11, 1
    %p92 = scmp.ne.s32.totalorder %s87, %s89
    %p93 = scmp.eq.s32.totalorder %s11, 0
    %p94 = por %p92, %p93
    %p95 = scmp.ne.s32.totalorder %s87, %s89
    %p96 = scmp.eq.s32.totalorder %s16, 1
    %p97 = por %p95, %p96
    %p98 = scmp.ne.s32.totalorder %s89, %s90
    %p99 = scmp.eq.s32.totalorder %s16, 0
    %p100 = por %p98, %p99
    %p101 = scmp.ne.s32.totalorder %s89, %s90
    %p102 = scmp.eq.s32.totalorder %s17, 1
    %p103 = por %p101, %p102
    %p105 = scmp.ne.s32.totalorder %s90, %s104
    %p106 = scmp.eq.s32.totalorder %s17, 0
    %p107 = por %p105, %p106
    %s109 = sadd.s32 %s108, 1
    %p112 = scmp.eq.s32.totalorder %s11, 1
    %p113 = scmp.ne.s32.totalorder %s108, %s110
    %p114 = scmp.eq.s32.totalorder %s11, 0
    %p115 = por %p113, %p114
    %p116 = scmp.ne.s32.totalorder %s108, %s110
    %p117 = scmp.eq.s32.totalorder %s16, 1
    %p118 = por %p116, %p117
    %p119 = scmp.ne.s32.totalorder %s110, %s111
    %p120 = scmp.eq.s32.totalorder %s16, 0
    %p121 = por %p119, %p120
    %p122 = scmp.ne.s32.totalorder %s110, %s111
    %p123 = scmp.eq.s32.totalorder %s17, 1
    %p124 = por %p122, %p123
    %p126 = scmp.ne.s32.totalorder %s111, %s125
    %p127 = scmp.eq.s32.totalorder %s17, 0
    %p128 = por %p126, %p127
    %s129 = ssub.s32 %s11, %s18
    %p130 = scmp.eq.s32.totalorder %s129, 0
    %s132 = sadd.s32 %s131, 1
    %s133 = scalar_select %p130, %s131, %s132
    %p136 = pneg %p130
    %p137 = scmp.eq.s32.totalorder %s11, 1
    %p138 = por %p136, %p137
    %p139 = scmp.ne.s32.totalorder %s131, %s134
    %p140 = scmp.eq.s32.totalorder %s11, 0
    %p141 = por %p139, %p140
    %p142 = scmp.ne.s32.totalorder %s131, %s134
    %p143 = scmp.eq.s32.totalorder %s16, 1
    %p144 = por %p142, %p143
    %p145 = scmp.ne.s32.totalorder %s134, %s135
    %p146 = scmp.eq.s32.totalorder %s16, 0
    %p147 = por %p145, %p146
    %p148 = scmp.ne.s32.totalorder %s134, %s135
    %p149 = scmp.eq.s32.totalorder %s17, 1
    %p150 = por %p148, %p149
    %p152 = scmp.ne.s32.totalorder %s135, %s151
    %p153 = scmp.eq.s32.totalorder %s17, 0
    %p154 = por %p152, %p153
    %p155 = scmp.le.s32.totalorder 1, %s11
    %p156 = scmp.lt.s32.totalorder %s11, 3
    %p157 = pnand %p155, %p156
    %p158 = pneg %p157
    // Predicated region
    $region9: #{am_transformer.1} parent=5 // pred_check
      _
    $region10: #{am_transformer.1} parent=5 // pred_check_branch
      %160 = sbr.rel (%p157) target = $region12
    $region11: #{am_transformer.1} parent=5 // pred_region
      %s161 = ssub.s32 %s11, 1
      // Predicated region
      $region13: #{am_transformer.1} parent=11 // pred_check
        %p162 = pneg %p58
      $region14: #{am_transformer.1} parent=11 // pred_check_branch
        %164 = sbr.rel (%p162) target = $region16
      $region15: #{am_transformer.1} parent=11 // pred_region
        _
      $region16: #{am_transformer.1} parent=11 // pred_fallthru
        _
      // Predicated region
      $region17: #{am_transformer.1} parent=11 // pred_check
        %p165 = pneg %p79
      $region18: #{am_transformer.1} parent=11 // pred_check_branch
        %167 = sbr.rel (%p165) target = $region20
      $region19: #{am_transformer.1} parent=11 // pred_region
        _
      $region20: #{am_transformer.1} parent=11 // pred_fallthru
        _
      // Predicated region
      $region21: #{am_transformer.1} parent=11 // pred_check
        %p168 = pneg %p100
      $region22: #{am_transformer.1} parent=11 // pred_check_branch
        %170 = sbr.rel (%p168) target = $region24
      $region23: #{am_transformer.1} parent=11 // pred_region
        _
      $region24: #{am_transformer.1} parent=11 // pred_fallthru
        _
      // Predicated region
      $region25: #{am_transformer.1} parent=11 // pred_check
        %p171 = pneg %p121
      $region26: #{am_transformer.1} parent=11 // pred_check_branch
        %173 = sbr.rel (%p171) target = $region28
      $region27: #{am_transformer.1} parent=11 // pred_region
        _
      $region28: #{am_transformer.1} parent=11 // pred_fallthru
        _
    $region12: #{am_transformer.1} parent=5 // pred_fallthru
      _
    %p174 = scmp.lt.s32.totalorder %s11, 2
    // Predicated region
    $region29: #{am_transformer.1} parent=5 // pred_check
      %p175 = pneg %p174
    $region30: #{am_transformer.1} parent=5 // pred_check_branch
      %177 = sbr.rel (%p175) target = $region32
    $region31: #{am_transformer.1} parent=5 // pred_region
      // Predicated region
      $region33: #{am_transformer.1} parent=31 // pred_check
        %p178 = pneg %p31
      $region34: #{am_transformer.1} parent=31 // pred_check_branch
        %180 = sbr.rel (%p178) target = $region36
      $region35: #{am_transformer.1} parent=31 // pred_region
        %s181 = smul.u32 2, %s11
        %p182 = scmp.lt.s32.totalorder %s181, 3
        %s183 = scalar_select %p182, %s181, 3
        %s184 = smul.addr %s183, 8
        %s185 = scalar_lea.vmem %s0, %s184
        %s186 = smul.u32 2, %s11
      $region36: #{am_transformer.1} parent=31 // pred_fallthru
        _
    $region32: #{am_transformer.1} parent=5 // pred_fallthru
      _
    %p187 = scmp.le.s32.totalorder 1, %s11
    %p188 = scmp.lt.s32.totalorder %s11, 3
    %p189 = pnand %p187, %p188
    %p190 = pneg %p189
    // Predicated region
    $region37: #{am_transformer.1} parent=5 // pred_check
      _
    $region38: #{am_transformer.1} parent=5 // pred_check_branch
      %192 = sbr.rel (%p189) target = $region40
    $region39: #{am_transformer.1} parent=5 // pred_region
      %s193 = ssub.s32 %s11, 1
      %s194 = smul.u32 2, %s16
      %p195 = scmp.lt.s32.totalorder %s194, 3
      %s196 = scalar_select %p195, %s194, 3
      %s197 = smul.addr %s196, 8
      %s198 = scalar_lea.vmem %s0, %s197
      %p199 = pneg %p37
      %p200 = pneg %p34
      %p201 = pneg %p58
      %p202 = pneg %p55
      %p203 = pneg %p79
      %p204 = pneg %p76
      %p205 = pneg %p100
      %p206 = pneg %p97
      %p207 = pneg %p121
      %p208 = pneg %p118
      %p209 = pneg %p147
      %p210 = pneg %p144
      %p211 = scmp.lt.s32.totalorder %s16, 1
      %s212 = scalar_select %p211, %s16, 1
      %s213 = smul.addr %s212, 8
      %s214 = scalar_lea.vmem %s5, %s213
      %s215 = smul.u32 2, %s16
      %p216 = scmp.lt.s32.totalorder %s215, 3
      %s217 = scalar_select %p216, %s215, 3
      %s218 = smul.addr %s217, 8
      %s219 = scalar_lea.vmem %s0, %s218
      %s220 = smul.u32 2, %s16
      %p221 = scmp.lt.s32.totalorder %s16, 1
      %s222 = scalar_select %p221, %s16, 1
      %s223 = smul.addr %s222, 8
      %s224 = scalar_lea.vmem %s5, %s223
      %v225 = vld [vmem:[%s219] sm:$0xff]
      %v226 = vld [vmem:[%s219 + $0x8] sm:$0xff]
      %v227 = vld [vmem:[%s4] sm:$0xff]
      %vm228 = vcmask 261120
      %v229 = vsel %vm228, %v225, 0.0
      %230 = vadd.xlane.f32.xlu0 %v229
      %v231 = vpop.xlane.xlu0 %230
      %v232 = vsel %vm228, %v226, 0.0
      %233 = vadd.xlane.f32.xlu0 %v232
      %v234 = vpop.xlane.xlu0 %233
      %v235 = vrcp.pop 32.0
      %v236 = vmul.f32 32.0, %v235
      %v237 = vsub.f32 1.0, %v236
      %v238 = vmul.f32 %v235, %v237
      %v239 = vadd.f32 %v235, %v238
      %vm240 = vweird.f32 %v235
      %v241 = vsel %vm240, %v235, %v239
      %v242 = vmul.f32 %v231, %v241
      %v243 = vmul.f32 %v234, %v241
      %v244 = vsub.f32 %v225, %v242
      %v245 = vsub.f32 %v226, %v243
      %v246 = vmul.f32 %v244, %v244
      %v247 = vmul.f32 %v245, %v245
      %v248 = vsel %vm228, %v246, 0.0
      %249 = vadd.xlane.f32.xlu0 %v248
      %v250 = vpop.xlane.xlu0 %249
      %v251 = vsel %vm228, %v247, 0.0
      %252 = vadd.xlane.f32.xlu0 %v251
      %v253 = vpop.xlane.xlu0 %252
      %v254 = vmul.f32 %v250, %v241
      %v255 = vmul.f32 %v253, %v241
      %v256 = vadd.f32 %v254, 1e-05
      %v257 = vadd.f32 %v255, 1e-05
      %v258 = vrsqrt.pop %v256
      %v259 = vmul.f32 %v258, %v256
      %v260 = vmul.f32 %v259, %v258
      %v261 = vmul.f32 0.5, %v260
      %v262 = vsub.f32 1.5, %v261
      %v263 = vmul.f32 %v258, %v262
      %vm264 = vweird.f32 %v256
      %vm265 = vweird.f32 %v258
      %vm266 = vmor %vm264, %vm265
      %v267 = vsel %vm266, %v258, %v263
      %v268 = vrsqrt.pop %v257
      %v269 = vmul.f32 %v268, %v257
      %v270 = vmul.f32 %v269, %v268
      %v271 = vmul.f32 0.5, %v270
      %v272 = vsub.f32 1.5, %v271
      %v273 = vmul.f32 %v268, %v272
      %vm274 = vweird.f32 %v257
      %vm275 = vweird.f32 %v268
      %vm276 = vmor %vm274, %vm275
      %v277 = vsel %vm276, %v268, %v273
      %v278 = vmul.f32 %v244, %v267
      %v279 = vmul.f32 %v245, %v277
      %v280 = vperm.slane %v227, 0
      %v281 = vmul.f32 %v278, %v280
      %v282 = vmul.f32 %v279, %v280
      %v283 = vperm.slane %v227, 1
      %v284 = vadd.f32 %v281, %v283
      %v285 = vadd.f32 %v282, %v283
      %v286 = vld [vmem:[%s1] sm:$0xff]
      %v287 = vld [vmem:[%s1 + $0x8] sm:$0xff]
      %v288 = vld [vmem:[%s1 + $0x10] sm:$0xff]
      %v289 = vld [vmem:[%s1 + $0x18] sm:$0xff]
      %v290 = vperm.slane %v227, 2
      %v292 = vsel %vm228, %v284, 0
      %v295 = vsel %vm228, %v285, 0
      %297 = vmatpush.msra.mxu0 0.0
      %298 = vmatpush.msra.mxu0 0.0
      %299 = vmatpush.msra.mxu0 0.0
      %300 = vmatpush.msra.mxu0 0.0
      %301 = vmatpush.msra.mxu0 0.0
      %302 = vmatpush.msra.mxu0 0.0
      %303 = vmatpush.msra.mxu0 0.0
      %304 = vmatpush.msra.mxu0 0.0
      %305 = vmatpush.msra.mxu0 0.0
      %306 = vmatpush.msra.mxu0 0.0
      %307 = vmatpush.msra.mxu0 0.0
      %308 = vmatpush.msra.mxu0 0.0
      %309 = vmatpush.msra.mxu0 %v289
      %310 = vmatpush.msra.mxu0 %v288
      %311 = vmatpush.msra.mxu0 %v287
      %312 = vmatpush.msra.mxu0 %v286
      %313 = vmatmul.f32.gmra.mxu0 %v292
      %v314 = vpop.f32.mrf.mxu0
      %v315 = vadd.f32 %v290, %v314
      %316 = vmatmul.f32.gmra.mxu0 %v295
      %v317 = vpop.f32.mrf.mxu0
      %v318 = vadd.f32 %v290, %v317
      %319 = vdwg.mxu0
      %v320 = vadd.f32 %v225, %v315
      %v321 = vadd.f32 %v226, %v318
      %v322 = vsel %vm228, %v320, 0.0
      %323 = vadd.xlane.f32.xlu0 %v322
      %v324 = vpop.xlane.xlu0 %323
      %v325 = vsel %vm228, %v321, 0.0
      %326 = vadd.xlane.f32.xlu0 %v325
      %v327 = vpop.xlane.xlu0 %326
      %v328 = vmul.f32 %v324, %v241
      %v329 = vmul.f32 %v327, %v241
      %v330 = vsub.f32 %v320, %v328
      %v331 = vsub.f32 %v321, %v329
      %v332 = vmul.f32 %v330, %v330
      %v333 = vmul.f32 %v331, %v331
      %v334 = vsel %vm228, %v332, 0.0
      %335 = vadd.xlane.f32.xlu0 %v334
      %v336 = vpop.xlane.xlu0 %335
      %v337 = vsel %vm228, %v333, 0.0
      %338 = vadd.xlane.f32.xlu0 %v337
      %v339 = vpop.xlane.xlu0 %338
      %v340 = vmul.f32 %v336, %v241
      %v341 = vmul.f32 %v339, %v241
      %v342 = vadd.f32 %v340, 1e-05
      %v343 = vadd.f32 %v341, 1e-05
      %v344 = vrsqrt.pop %v342
      %v345 = vmul.f32 %v344, %v342
      %v346 = vmul.f32 %v345, %v344
      %v347 = vmul.f32 0.5, %v346
      %v348 = vsub.f32 1.5, %v347
      %v349 = vmul.f32 %v344, %v348
      %vm350 = vweird.f32 %v342
      %vm351 = vweird.f32 %v344
      %vm352 = vmor %vm350, %vm351
      %v353 = vsel %vm352, %v344, %v349
      %v354 = vrsqrt.pop %v343
      %v355 = vmul.f32 %v354, %v343
      %v356 = vmul.f32 %v355, %v354
      %v357 = vmul.f32 0.5, %v356
      %v358 = vsub.f32 1.5, %v357
      %v359 = vmul.f32 %v354, %v358
      %vm360 = vweird.f32 %v343
      %vm361 = vweird.f32 %v354
      %vm362 = vmor %vm360, %vm361
      %v363 = vsel %vm362, %v354, %v359
      %v364 = vmul.f32 %v330, %v353
      %v365 = vmul.f32 %v331, %v363
      %v366 = vperm.slane %v227, 3
      %v367 = vmul.f32 %v364, %v366
      %v368 = vmul.f32 %v365, %v366
      %v369 = vperm.slane %v227, 4
      %v370 = vadd.f32 %v367, %v369
      %v371 = vadd.f32 %v368, %v369
      %v372 = vld [vmem:[%s2] sm:$0xff]
      %v373 = vld [vmem:[%s2 + $0x8] sm:$0xff]
      %v374 = vld [vmem:[%s2 + $0x10] sm:$0xff]
      %v375 = vld [vmem:[%s2 + $0x18] sm:$0xff]
      %v376 = vperm.slane %v227, 5
      %v378 = vsel %vm228, %v370, 0
      %v381 = vsel %vm228, %v371, 0
      %383 = vmatpush.msra.mxu0 0.0
      %384 = vmatpush.msra.mxu0 0.0
      %385 = vmatpush.msra.mxu0 0.0
      %386 = vmatpush.msra.mxu0 0.0
      %387 = vmatpush.msra.mxu0 0.0
      %388 = vmatpush.msra.mxu0 0.0
      %389 = vmatpush.msra.mxu0 0.0
      %390 = vmatpush.msra.mxu0 0.0
      %391 = vmatpush.msra.mxu0 0.0
      %392 = vmatpush.msra.mxu0 0.0
      %393 = vmatpush.msra.mxu0 0.0
      %394 = vmatpush.msra.mxu0 0.0
      %395 = vmatpush.msra.mxu0 %v375
      %396 = vmatpush.msra.mxu0 %v374
      %397 = vmatpush.msra.mxu0 %v373
      %398 = vmatpush.msra.mxu0 %v372
      %399 = vmatmul.f32.gmra.mxu0 %v378
      %v400 = vpop.f32.mrf.mxu0
      %v401 = vadd.f32 %v376, %v400
      %402 = vmatmul.f32.gmra.mxu0 %v381
      %v403 = vpop.f32.mrf.mxu0
      %v404 = vadd.f32 %v376, %v403
      %405 = vdwg.mxu0
      %v406 = vmul.f32 %v401, 0.5
      %v407 = vmul.f32 %v404, 0.5
      %v408 = vmul.f32 %v401, 0.70710677
      %v409 = vmul.f32 %v404, 0.70710677
      %v410 = vmul.f32 %v408, %v408
      %v411 = vmin.f32 16.0, %v410
      %v412 = vmul.f32 %v411, 2.1237322e-06
      %v413 = vadd.f32 %v412, 0.00028619796
      %v414 = vmul.f32 %v411, %v413
      %v415 = vadd.f32 %v414, 0.0036580483
      %v416 = vmul.f32 %v411, %v415
      %v417 = vadd.f32 %v416, 0.05243302
      %v418 = vmul.f32 %v411, %v417
      %v419 = vadd.f32 %v418, 0.18741608
      %v420 = vmul.f32 %v411, %v419
      %v421 = vadd.f32 %v420, 1.1283791
      %v422 = vmul.f32 %v408, %v421
      %v423 = vmul.f32 %v411, 3.8918573e-05
      %v424 = vadd.f32 %v423, 0.001143296
      %v425 = vmul.f32 %v411, %v424
      %v426 = vadd.f32 %v425, 0.014752088
      %v427 = vmul.f32 %v411, %v426
      %v428 = vadd.f32 %v427, 0.112945676
      %v429 = vmul.f32 %v411, %v428
      %v430 = vadd.f32 %v429, 0.4994258
      %v431 = vmul.f32 %v411, %v430
      %v432 = vadd.f32 %v431, 1.0
      %v433 = vrcp.pop %v432
      %v434 = vmul.f32 %v432, %v433
      %v435 = vsub.f32 1.0, %v434
      %v436 = vmul.f32 %v433, %v435
      %v437 = vadd.f32 %v433, %v436
      %vm438 = vweird.f32 %v432
      %vm439 = vweird.f32 %v433
      %vm440 = vmor %vm438, %vm439
      %v441 = vsel %vm440, %v433, %v437
      %v442 = vand.u32 2147483647, %v432
      %vm443 = vcmp.eq.f32.partialorder %v442, 8.507059e+37
      %v444 = vand.u32 %v432, 2147483648
      %v445 = vor.u32 1.1754944e-38, %v444
      %v446 = vsel %vm443, %v445, %v441
      %v447 = vmul.f32 %v422, %v446
      %v448 = vmin.f32 %v447, 1.0
      %v449 = vmax.f32 %v448, -1.0
      %v450 = vmul.f32 %v409, %v409
      %v451 = vmin.f32 16.0, %v450
      %v452 = vmul.f32 %v451, 2.1237322e-06
      %v453 = vadd.f32 %v452, 0.00028619796
      %v454 = vmul.f32 %v451, %v453
      %v455 = vadd.f32 %v454, 0.0036580483
      %v456 = vmul.f32 %v451, %v455
      %v457 = vadd.f32 %v456, 0.05243302
      %v458 = vmul.f32 %v451, %v457
      %v459 = vadd.f32 %v458, 0.18741608
      %v460 = vmul.f32 %v451, %v459
      %v461 = vadd.f32 %v460, 1.1283791
      %v462 = vmul.f32 %v409, %v461
      %v463 = vmul.f32 %v451, 3.8918573e-05
      %v464 = vadd.f32 %v463, 0.001143296
      %v465 = vmul.f32 %v451, %v464
      %v466 = vadd.f32 %v465, 0.014752088
      %v467 = vmul.f32 %v451, %v466
      %v468 = vadd.f32 %v467, 0.112945676
      %v469 = vmul.f32 %v451, %v468
      %v470 = vadd.f32 %v469, 0.4994258
      %v471 = vmul.f32 %v451, %v470
      %v472 = vadd.f32 %v471, 1.0
      %v473 = vrcp.pop %v472
      %v474 = vmul.f32 %v472, %v473
      %v475 = vsub.f32 1.0, %v474
      %v476 = vmul.f32 %v473, %v475
      %v477 = vadd.f32 %v473, %v476
      %vm478 = vweird.f32 %v472
      %vm479 = vweird.f32 %v473
      %vm480 = vmor %vm478, %vm479
      %v481 = vsel %vm480, %v473, %v477
      %v482 = vand.u32 2147483647, %v472
      %vm483 = vcmp.eq.f32.partialorder %v482, 8.507059e+37
      %v484 = vand.u32 %v472, 2147483648
      %v485 = vor.u32 1.1754944e-38, %v484
      %v486 = vsel %vm483, %v485, %v481
      %v487 = vmul.f32 %v462, %v486
      %v488 = vmin.f32 %v487, 1.0
      %v489 = vmax.f32 %v488, -1.0
      %v490 = vadd.f32 %v449, 1.0
      %v491 = vadd.f32 %v489, 1.0
      %v492 = vmul.f32 %v406, %v490
      %v493 = vmul.f32 %v407, %v491
      %v494 = vld [vmem:[%s3] sm:$0xff]
      %v495 = vld [vmem:[%s3 + $0x8] sm:$0xff]
      %v496 = vld [vmem:[%s3 + $0x10] sm:$0xff]
      %v497 = vld [vmem:[%s3 + $0x18] sm:$0xff]
      %v498 = vld [vmem:[%s3 + $0x20] sm:$0xff]
      %v499 = vld [vmem:[%s3 + $0x28] sm:$0xff]
      %v500 = vld [vmem:[%s3 + $0x30] sm:$0xff]
      %v501 = vld [vmem:[%s3 + $0x38] sm:$0xff]
      %v502 = vld [vmem:[%s3 + $0x40] sm:$0xff]
      %v503 = vld [vmem:[%s3 + $0x48] sm:$0xff]
      %v504 = vld [vmem:[%s3 + $0x50] sm:$0xff]
      %v505 = vld [vmem:[%s3 + $0x58] sm:$0xff]
      %v506 = vld [vmem:[%s3 + $0x60] sm:$0xff]
      %v507 = vld [vmem:[%s3 + $0x68] sm:$0xff]
      %v508 = vld [vmem:[%s3 + $0x70] sm:$0xff]
      %v509 = vld [vmem:[%s3 + $0x78] sm:$0xff]
      %v510 = vperm.slane %v227, 6
      %511 = vmatpush.msra.mxu0 %v509
      %512 = vmatpush.msra.mxu0 %v508
      %513 = vmatpush.msra.mxu0 %v507
      %514 = vmatpush.msra.mxu0 %v506
      %515 = vmatpush.msra.mxu0 %v505
      %516 = vmatpush.msra.mxu0 %v504
      %517 = vmatpush.msra.mxu0 %v503
      %518 = vmatpush.msra.mxu0 %v502
      %519 = vmatpush.msra.mxu0 %v501
      %520 = vmatpush.msra.mxu0 %v500
      %521 = vmatpush.msra.mxu0 %v499
      %522 = vmatpush.msra.mxu0 %v498
      %523 = vmatpush.msra.mxu0 %v497
      %524 = vmatpush.msra.mxu0 %v496
      %525 = vmatpush.msra.mxu0 %v495
      %526 = vmatpush.msra.mxu0 %v494
      %527 = vmatmul.f32.gmra.mxu0 %v492
      %v528 = vpop.f32.mrf.mxu0
      %v529 = vadd.f32 %v510, %v528
      %530 = vmatmul.f32.gmra.mxu0 %v493
      %v531 = vpop.f32.mrf.mxu0
      %v532 = vadd.f32 %v510, %v531
      %533 = vdwg.mxu0
      %v534 = vmul.f32 %v529, 0.5
      %v535 = vmul.f32 %v532, 0.5
      %v536 = vmul.f32 %v529, 0.70710677
      %v537 = vmul.f32 %v532, 0.70710677
      %v538 = vmul.f32 %v536, %v536
      %v539 = vmin.f32 16.0, %v538
      %v540 = vmul.f32 %v539, 2.1237322e-06
      %v541 = vadd.f32 %v540, 0.00028619796
      %v542 = vmul.f32 %v539, %v541
      %v543 = vadd.f32 %v542, 0.0036580483
      %v544 = vmul.f32 %v539, %v543
      %v545 = vadd.f32 %v544, 0.05243302
      %v546 = vmul.f32 %v539, %v545
      %v547 = vadd.f32 %v546, 0.18741608
      %v548 = vmul.f32 %v539, %v547
      %v549 = vadd.f32 %v548, 1.1283791
      %v550 = vmul.f32 %v536, %v549
      %v551 = vmul.f32 %v539, 3.8918573e-05
      %v552 = vadd.f32 %v551, 0.001143296
      %v553 = vmul.f32 %v539, %v552
      %v554 = vadd.f32 %v553, 0.014752088
      %v555 = vmul.f32 %v539, %v554
      %v556 = vadd.f32 %v555, 0.112945676
      %v557 = vmul.f32 %v539, %v556
      %v558 = vadd.f32 %v557, 0.4994258
      %v559 = vmul.f32 %v539, %v558
      %v560 = vadd.f32 %v559, 1.0
      %v561 = vrcp.pop %v560
      %v562 = vmul.f32 %v560, %v561
      %v563 = vsub.f32 1.0, %v562
      %v564 = vmul.f32 %v561, %v563
      %v565 = vadd.f32 %v561, %v564
      %vm566 = vweird.f32 %v560
      %vm567 = vweird.f32 %v561
      %vm568 = vmor %vm566, %vm567
      %v569 = vsel %vm568, %v561, %v565
      %v570 = vand.u32 2147483647, %v560
      %vm571 = vcmp.eq.f32.partialorder %v570, 8.507059e+37
      %v572 = vand.u32 %v560, 2147483648
      %v573 = vor.u32 1.1754944e-38, %v572
      %v574 = vsel %vm571, %v573, %v569
      %v575 = vmul.f32 %v550, %v574
      %v576 = vmin.f32 %v575, 1.0
      %v577 = vmax.f32 %v576, -1.0
      %v578 = vmul.f32 %v537, %v537
      %v579 = vmin.f32 16.0, %v578
      %v580 = vmul.f32 %v579, 2.1237322e-06
      %v581 = vadd.f32 %v580, 0.00028619796
      %v582 = vmul.f32 %v579, %v581
      %v583 = vadd.f32 %v582, 0.0036580483
      %v584 = vmul.f32 %v579, %v583
      %v585 = vadd.f32 %v584, 0.05243302
      %v586 = vmul.f32 %v579, %v585
      %v587 = vadd.f32 %v586, 0.18741608
      %v588 = vmul.f32 %v579, %v587
      %v589 = vadd.f32 %v588, 1.1283791
      %v590 = vmul.f32 %v537, %v589
      %v591 = vmul.f32 %v579, 3.8918573e-05
      %v592 = vadd.f32 %v591, 0.001143296
      %v593 = vmul.f32 %v579, %v592
      %v594 = vadd.f32 %v593, 0.014752088
      %v595 = vmul.f32 %v579, %v594
      %v596 = vadd.f32 %v595, 0.112945676
      %v597 = vmul.f32 %v579, %v596
      %v598 = vadd.f32 %v597, 0.4994258
      %v599 = vmul.f32 %v579, %v598
      %v600 = vadd.f32 %v599, 1.0
      %v601 = vrcp.pop %v600
      %v602 = vmul.f32 %v600, %v601
      %v603 = vsub.f32 1.0, %v602
      %v604 = vmul.f32 %v601, %v603
      %v605 = vadd.f32 %v601, %v604
      %vm606 = vweird.f32 %v600
      %vm607 = vweird.f32 %v601
      %vm608 = vmor %vm606, %vm607
      %v609 = vsel %vm608, %v601, %v605
      %v610 = vand.u32 2147483647, %v600
      %vm611 = vcmp.eq.f32.partialorder %v610, 8.507059e+37
      %v612 = vand.u32 %v600, 2147483648
      %v613 = vor.u32 1.1754944e-38, %v612
      %v614 = vsel %vm611, %v613, %v609
      %v615 = vmul.f32 %v590, %v614
      %v616 = vmin.f32 %v615, 1.0
      %v617 = vmax.f32 %v616, -1.0
      %v618 = vadd.f32 %v577, 1.0
      %v619 = vadd.f32 %v617, 1.0
      %v620 = vmul.f32 %v534, %v618
      %v621 = vmul.f32 %v535, %v619
      %v622 = vadd.f32 %v320, %v620
      %v623 = vadd.f32 %v321, %v621
      %s624 = scalar_lea.vmem %s4, 8
      %v625 = vld [vmem:[%s624] sm:$0xff]
      %v626 = vsel %vm228, %v622, 0.0
      %627 = vadd.xlane.f32.xlu0 %v626
      %v628 = vpop.xlane.xlu0 %627
      %v629 = vsel %vm228, %v623, 0.0
      %630 = vadd.xlane.f32.xlu0 %v629
      %v631 = vpop.xlane.xlu0 %630
      %v632 = vmul.f32 %v628, %v241
      %v633 = vmul.f32 %v631, %v241
      %v634 = vsub.f32 %v622, %v632
      %v635 = vsub.f32 %v623, %v633
      %v636 = vmul.f32 %v634, %v634
      %v637 = vmul.f32 %v635, %v635
      %v638 = vsel %vm228, %v636, 0.0
      %639 = vadd.xlane.f32.xlu0 %v638
      %v640 = vpop.xlane.xlu0 %639
      %v641 = vsel %vm228, %v637, 0.0
      %642 = vadd.xlane.f32.xlu0 %v641
      %v643 = vpop.xlane.xlu0 %642
      %v644 = vmul.f32 %v640, %v241
      %v645 = vmul.f32 %v643, %v241
      %v646 = vadd.f32 %v644, 1e-05
      %v647 = vadd.f32 %v645, 1e-05
      %v648 = vrsqrt.pop %v646
      %v649 = vmul.f32 %v648, %v646
      %v650 = vmul.f32 %v649, %v648
      %v651 = vmul.f32 0.5, %v650
      %v652 = vsub.f32 1.5, %v651
      %v653 = vmul.f32 %v648, %v652
      %vm654 = vweird.f32 %v646
      %vm655 = vweird.f32 %v648
      %vm656 = vmor %vm654, %vm655
      %v657 = vsel %vm656, %v648, %v653
      %v658 = vrsqrt.pop %v647
      %v659 = vmul.f32 %v658, %v647
      %v660 = vmul.f32 %v659, %v658
      %v661 = vmul.f32 0.5, %v660
      %v662 = vsub.f32 1.5, %v661
      %v663 = vmul.f32 %v658, %v662
      %vm664 = vweird.f32 %v647
      %vm665 = vweird.f32 %v658
      %vm666 = vmor %vm664, %vm665
      %v667 = vsel %vm666, %v658, %v663
      %v668 = vmul.f32 %v634, %v657
      %v669 = vmul.f32 %v635, %v667
      %v670 = vperm.slane %v625, 0
      %v671 = vmul.f32 %v668, %v670
      %v672 = vmul.f32 %v669, %v670
      %v673 = vperm.slane %v625, 1
      %v674 = vadd.f32 %v671, %v673
      %v675 = vadd.f32 %v672, %v673
      %s676 = scalar_lea.vmem %s1, 32
      %v677 = vld [vmem:[%s676] sm:$0xff]
      %v678 = vld [vmem:[%s676 + $0x8] sm:$0xff]
      %v679 = vld [vmem:[%s676 + $0x10] sm:$0xff]
      %v680 = vld [vmem:[%s676 + $0x18] sm:$0xff]
      %v681 = vperm.slane %v625, 2
      %v683 = vsel %vm228, %v674, 0
      %v686 = vsel %vm228, %v675, 0
      %688 = vmatpush.msra.mxu0 0.0
      %689 = vmatpush.msra.mxu0 0.0
      %690 = vmatpush.msra.mxu0 0.0
      %691 = vmatpush.msra.mxu0 0.0
      %692 = vmatpush.msra.mxu0 0.0
      %693 = vmatpush.msra.mxu0 0.0
      %694 = vmatpush.msra.mxu0 0.0
      %695 = vmatpush.msra.mxu0 0.0
      %696 = vmatpush.msra.mxu0 0.0
      %697 = vmatpush.msra.mxu0 0.0
      %698 = vmatpush.msra.mxu0 0.0
      %699 = vmatpush.msra.mxu0 0.0
      %700 = vmatpush.msra.mxu0 %v680
      %701 = vmatpush.msra.mxu0 %v679
      %702 = vmatpush.msra.mxu0 %v678
      %703 = vmatpush.msra.mxu0 %v677
      %704 = vmatmul.f32.gmra.mxu0 %v683
      %v705 = vpop.f32.mrf.mxu0
      %v706 = vadd.f32 %v681, %v705
      %707 = vmatmul.f32.gmra.mxu0 %v686
      %v708 = vpop.f32.mrf.mxu0
      %v709 = vadd.f32 %v681, %v708
      %710 = vdwg.mxu0
      %v711 = vadd.f32 %v622, %v706
      %v712 = vadd.f32 %v623, %v709
      %v713 = vsel %vm228, %v711, 0.0
      %714 = vadd.xlane.f32.xlu0 %v713
      %v715 = vpop.xlane.xlu0 %714
      %v716 = vsel %vm228, %v712, 0.0
      %717 = vadd.xlane.f32.xlu0 %v716
      %v718 = vpop.xlane.xlu0 %717
      %v719 = vmul.f32 %v715, %v241
      %v720 = vmul.f32 %v718, %v241
      %v721 = vsub.f32 %v711, %v719
      %v722 = vsub.f32 %v712, %v720
      %v723 = vmul.f32 %v721, %v721
      %v724 = vmul.f32 %v722, %v722
      %v725 = vsel %vm228, %v723, 0.0
      %726 = vadd.xlane.f32.xlu0 %v725
      %v727 = vpop.xlane.xlu0 %726
      %v728 = vsel %vm228, %v724, 0.0
      %729 = vadd.xlane.f32.xlu0 %v728
      %v730 = vpop.xlane.xlu0 %729
      %v731 = vmul.f32 %v727, %v241
      %v732 = vmul.f32 %v730, %v241
      %v733 = vadd.f32 %v731, 1e-05
      %v734 = vadd.f32 %v732, 1e-05
      %v735 = vrsqrt.pop %v733
      %v736 = vmul.f32 %v735, %v733
      %v737 = vmul.f32 %v736, %v735
      %v738 = vmul.f32 0.5, %v737
      %v739 = vsub.f32 1.5, %v738
      %v740 = vmul.f32 %v735, %v739
      %vm741 = vweird.f32 %v733
      %vm742 = vweird.f32 %v735
      %vm743 = vmor %vm741, %vm742
      %v744 = vsel %vm743, %v735, %v740
      %v745 = vrsqrt.pop %v734
      %v746 = vmul.f32 %v745, %v734
      %v747 = vmul.f32 %v746, %v745
      %v748 = vmul.f32 0.5, %v747
      %v749 = vsub.f32 1.5, %v748
      %v750 = vmul.f32 %v745, %v749
      %vm751 = vweird.f32 %v734
      %vm752 = vweird.f32 %v745
      %vm753 = vmor %vm751, %vm752
      %v754 = vsel %vm753, %v745, %v750
      %v755 = vmul.f32 %v721, %v744
      %v756 = vmul.f32 %v722, %v754
      %v757 = vperm.slane %v625, 3
      %v758 = vmul.f32 %v755, %v757
      %v759 = vmul.f32 %v756, %v757
      %v760 = vperm.slane %v625, 4
      %v761 = vadd.f32 %v758, %v760
      %v762 = vadd.f32 %v759, %v760
      %s763 = scalar_lea.vmem %s2, 32
      %v764 = vld [vmem:[%s763] sm:$0xff]
      %v765 = vld [vmem:[%s763 + $0x8] sm:$0xff]
      %v766 = vld [vmem:[%s763 + $0x10] sm:$0xff]
      %v767 = vld [vmem:[%s763 + $0x18] sm:$0xff]
      %v768 = vperm.slane %v625, 5
      %v770 = vsel %vm228, %v761, 0
      %v773 = vsel %vm228, %v762, 0
      %775 = vmatpush.msra.mxu0 0.0
      %776 = vmatpush.msra.mxu0 0.0
      %777 = vmatpush.msra.mxu0 0.0
      %778 = vmatpush.msra.mxu0 0.0
      %779 = vmatpush.msra.mxu0 0.0
      %780 = vmatpush.msra.mxu0 0.0
      %781 = vmatpush.msra.mxu0 0.0
      %782 = vmatpush.msra.mxu0 0.0
      %783 = vmatpush.msra.mxu0 0.0
      %784 = vmatpush.msra.mxu0 0.0
      %785 = vmatpush.msra.mxu0 0.0
      %786 = vmatpush.msra.mxu0 0.0
      %787 = vmatpush.msra.mxu0 %v767
      %788 = vmatpush.msra.mxu0 %v766
      %789 = vmatpush.msra.mxu0 %v765
      %790 = vmatpush.msra.mxu0 %v764
      %791 = vmatmul.f32.gmra.mxu0 %v770
      %v792 = vpop.f32.mrf.mxu0
      %v793 = vadd.f32 %v768, %v792
      %794 = vmatmul.f32.gmra.mxu0 %v773
      %v795 = vpop.f32.mrf.mxu0
      %v796 = vadd.f32 %v768, %v795
      %797 = vdwg.mxu0
      %v798 = vmul.f32 %v793, 0.5
      %v799 = vmul.f32 %v796, 0.5
      %v800 = vmul.f32 %v793, 0.70710677
      %v801 = vmul.f32 %v796, 0.70710677
      %v802 = vmul.f32 %v800, %v800
      %v803 = vmin.f32 16.0, %v802
      %v804 = vmul.f32 %v803, 2.1237322e-06
      %v805 = vadd.f32 %v804, 0.00028619796
      %v806 = vmul.f32 %v803, %v805
      %v807 = vadd.f32 %v806, 0.0036580483
      %v808 = vmul.f32 %v803, %v807
      %v809 = vadd.f32 %v808, 0.05243302
      %v810 = vmul.f32 %v803, %v809
      %v811 = vadd.f32 %v810, 0.18741608
      %v812 = vmul.f32 %v803, %v811
      %v813 = vadd.f32 %v812, 1.1283791
      %v814 = vmul.f32 %v800, %v813
      %v815 = vmul.f32 %v803, 3.8918573e-05
      %v816 = vadd.f32 %v815, 0.001143296
      %v817 = vmul.f32 %v803, %v816
      %v818 = vadd.f32 %v817, 0.014752088
      %v819 = vmul.f32 %v803, %v818
      %v820 = vadd.f32 %v819, 0.112945676
      %v821 = vmul.f32 %v803, %v820
      %v822 = vadd.f32 %v821, 0.4994258
      %v823 = vmul.f32 %v803, %v822
      %v824 = vadd.f32 %v823, 1.0
      %v825 = vrcp.pop %v824
      %v826 = vmul.f32 %v824, %v825
      %v827 = vsub.f32 1.0, %v826
      %v828 = vmul.f32 %v825, %v827
      %v829 = vadd.f32 %v825, %v828
      %vm830 = vweird.f32 %v824
      %vm831 = vweird.f32 %v825
      %vm832 = vmor %vm830, %vm831
      %v833 = vsel %vm832, %v825, %v829
      %v834 = vand.u32 2147483647, %v824
      %vm835 = vcmp.eq.f32.partialorder %v834, 8.507059e+37
      %v836 = vand.u32 %v824, 2147483648
      %v837 = vor.u32 1.1754944e-38, %v836
      %v838 = vsel %vm835, %v837, %v833
      %v839 = vmul.f32 %v814, %v838
      %v840 = vmin.f32 %v839, 1.0
      %v841 = vmax.f32 %v840, -1.0
      %v842 = vmul.f32 %v801, %v801
      %v843 = vmin.f32 16.0, %v842
      %v844 = vmul.f32 %v843, 2.1237322e-06
      %v845 = vadd.f32 %v844, 0.00028619796
      %v846 = vmul.f32 %v843, %v845
      %v847 = vadd.f32 %v846, 0.0036580483
      %v848 = vmul.f32 %v843, %v847
      %v849 = vadd.f32 %v848, 0.05243302
      %v850 = vmul.f32 %v843, %v849
      %v851 = vadd.f32 %v850, 0.18741608
      %v852 = vmul.f32 %v843, %v851
      %v853 = vadd.f32 %v852, 1.1283791
      %v854 = vmul.f32 %v801, %v853
      %v855 = vmul.f32 %v843, 3.8918573e-05
      %v856 = vadd.f32 %v855, 0.001143296
      %v857 = vmul.f32 %v843, %v856
      %v858 = vadd.f32 %v857, 0.014752088
      %v859 = vmul.f32 %v843, %v858
      %v860 = vadd.f32 %v859, 0.112945676
      %v861 = vmul.f32 %v843, %v860
      %v862 = vadd.f32 %v861, 0.4994258
      %v863 = vmul.f32 %v843, %v862
      %v864 = vadd.f32 %v863, 1.0
      %v865 = vrcp.pop %v864
      %v866 = vmul.f32 %v864, %v865
      %v867 = vsub.f32 1.0, %v866
      %v868 = vmul.f32 %v865, %v867
      %v869 = vadd.f32 %v865, %v868
      %vm870 = vweird.f32 %v864
      %vm871 = vweird.f32 %v865
      %vm872 = vmor %vm870, %vm871
      %v873 = vsel %vm872, %v865, %v869
      %v874 = vand.u32 2147483647, %v864
      %vm875 = vcmp.eq.f32.partialorder %v874, 8.507059e+37
      %v876 = vand.u32 %v864, 2147483648
      %v877 = vor.u32 1.1754944e-38, %v876
      %v878 = vsel %vm875, %v877, %v873
      %v879 = vmul.f32 %v854, %v878
      %v880 = vmin.f32 %v879, 1.0
      %v881 = vmax.f32 %v880, -1.0
      %v882 = vadd.f32 %v841, 1.0
      %v883 = vadd.f32 %v881, 1.0
      %v884 = vmul.f32 %v798, %v882
      %v885 = vmul.f32 %v799, %v883
      %s886 = scalar_lea.vmem %s3, 128
      %v887 = vld [vmem:[%s886] sm:$0xff]
      %v888 = vld [vmem:[%s886 + $0x8] sm:$0xff]
      %v889 = vld [vmem:[%s886 + $0x10] sm:$0xff]
      %v890 = vld [vmem:[%s886 + $0x18] sm:$0xff]
      %v891 = vld [vmem:[%s886 + $0x20] sm:$0xff]
      %v892 = vld [vmem:[%s886 + $0x28] sm:$0xff]
      %v893 = vld [vmem:[%s886 + $0x30] sm:$0xff]
      %v894 = vld [vmem:[%s886 + $0x38] sm:$0xff]
      %v895 = vld [vmem:[%s886 + $0x40] sm:$0xff]
      %v896 = vld [vmem:[%s886 + $0x48] sm:$0xff]
      %v897 = vld [vmem:[%s886 + $0x50] sm:$0xff]
      %v898 = vld [vmem:[%s886 + $0x58] sm:$0xff]
      %v899 = vld [vmem:[%s886 + $0x60] sm:$0xff]
      %v900 = vld [vmem:[%s886 + $0x68] sm:$0xff]
      %v901 = vld [vmem:[%s886 + $0x70] sm:$0xff]
      %v902 = vld [vmem:[%s886 + $0x78] sm:$0xff]
      %v903 = vperm.slane %v625, 6
      %904 = vmatpush.msra.mxu0 %v902
      %905 = vmatpush.msra.mxu0 %v901
      %906 = vmatpush.msra.mxu0 %v900
      %907 = vmatpush.msra.mxu0 %v899
      %908 = vmatpush.msra.mxu0 %v898
      %909 = vmatpush.msra.mxu0 %v897
      %910 = vmatpush.msra.mxu0 %v896
      %911 = vmatpush.msra.mxu0 %v895
      %912 = vmatpush.msra.mxu0 %v894
      %913 = vmatpush.msra.mxu0 %v893
      %914 = vmatpush.msra.mxu0 %v892
      %915 = vmatpush.msra.mxu0 %v891
      %916 = vmatpush.msra.mxu0 %v890
      %917 = vmatpush.msra.mxu0 %v889
      %918 = vmatpush.msra.mxu0 %v888
      %919 = vmatpush.msra.mxu0 %v887
      %920 = vmatmul.f32.gmra.mxu0 %v884
      %v921 = vpop.f32.mrf.mxu0
      %v922 = vadd.f32 %v903, %v921
      %923 = vmatmul.f32.gmra.mxu0 %v885
      %v924 = vpop.f32.mrf.mxu0
      %925 = vdwg.mxu0
      %v926 = vmul.f32 %v922, 0.5
      %v927 = vmul.f32 %v922, 0.70710677
      %v928 = vmul.f32 %v927, %v927
      %v929 = vmin.f32 16.0, %v928
      %v930 = vmul.f32 %v929, 2.1237322e-06
      %v931 = vadd.f32 %v930, 0.00028619796
      %v932 = vmul.f32 %v929, %v931
      %v933 = vadd.f32 %v932, 0.0036580483
      %v934 = vmul.f32 %v929, %v933
      %v935 = vadd.f32 %v934, 0.05243302
      %v936 = vmul.f32 %v929, %v935
      %v937 = vadd.f32 %v936, 0.18741608
      %v938 = vmul.f32 %v929, %v937
      %v939 = vadd.f32 %v938, 1.1283791
      %v940 = vmul.f32 %v927, %v939
      %v941 = vmul.f32 %v929, 3.8918573e-05
      %v942 = vadd.f32 %v941, 0.001143296
      %v943 = vmul.f32 %v929, %v942
      %v944 = vadd.f32 %v943, 0.014752088
      %v945 = vmul.f32 %v929, %v944
      %v946 = vadd.f32 %v945, 0.112945676
      %v947 = vmul.f32 %v929, %v946
      %v948 = vadd.f32 %v947, 0.4994258
      %v949 = vmul.f32 %v929, %v948
      %v950 = vadd.f32 %v949, 1.0
      %v951 = vrcp.pop %v950
      %v952 = vmul.f32 %v950, %v951
      %v953 = vsub.f32 1.0, %v952
      %v954 = vmul.f32 %v951, %v953
      %v955 = vadd.f32 %v951, %v954
      %vm956 = vweird.f32 %v950
      %vm957 = vweird.f32 %v951
      %vm958 = vmor %vm956, %vm957
      %v959 = vsel %vm958, %v951, %v955
      %v960 = vand.u32 2147483647, %v950
      %vm961 = vcmp.eq.f32.partialorder %v960, 8.507059e+37
      %v962 = vand.u32 %v950, 2147483648
      %v963 = vor.u32 1.1754944e-38, %v962
      %v964 = vsel %vm961, %v963, %v959
      %v965 = vmul.f32 %v940, %v964
      %v966 = vmin.f32 %v965, 1.0
      %v967 = vmax.f32 %v966, -1.0
      %v968 = vadd.f32 %v967, 1.0
      %v969 = vmul.f32 %v926, %v968
      %v970 = vadd.f32 %v711, %v969
      %s971 = scalar_lea.vmem %s4, 16
      %v972 = vld [vmem:[%s971] sm:$0xff]
      %s973 = scalar_lea.vmem %s1, 64
      %v974 = vld [vmem:[%s973] sm:$0xff]
      %v975 = vld [vmem:[%s973 + $0x8] sm:$0xff]
      %v976 = vld [vmem:[%s973 + $0x10] sm:$0xff]
      %v977 = vld [vmem:[%s973 + $0x18] sm:$0xff]
      %v978 = vperm.slane %v972, 0
      %v980 = vsel %vm228, %v970, 0
      %982 = vmatpush.msra.mxu0 0.0
      %983 = vmatpush.msra.mxu0 0.0
      %984 = vmatpush.msra.mxu0 0.0
      %985 = vmatpush.msra.mxu0 0.0
      %986 = vmatpush.msra.mxu0 0.0
      %987 = vmatpush.msra.mxu0 0.0
      %988 = vmatpush.msra.mxu0 0.0
      %989 = vmatpush.msra.mxu0 0.0
      %990 = vmatpush.msra.mxu0 0.0
      %991 = vmatpush.msra.mxu0 0.0
      %992 = vmatpush.msra.mxu0 0.0
      %993 = vmatpush.msra.mxu0 0.0
      %994 = vmatpush.msra.mxu0 %v977
      %995 = vmatpush.msra.mxu0 %v976
      %996 = vmatpush.msra.mxu0 %v975
      %997 = vmatpush.msra.mxu0 %v974
      %998 = vmatmul.f32.gmra.mxu0 %v980
      %v999 = vpop.f32.mrf.mxu0
      %v1000 = vadd.f32 %v978, %v999
      %1001 = vdwg.mxu0
      %v1002 = vmax.f32 %v1000, 0.0
      %v1003 = vperm.slane %v972, 1
      %v1004 = vmul.f32 %v1002, %v1003
      %v1005 = vsel %vm228, %v1004, 0.0
      %1006 = vadd.xlane.f32.xlu0 %v1005
      %v1007 = vpop.xlane.xlu0 %1006
      %v1008 = vperm.slane %v972, 2
      %v1009 = vadd.f32 %v1007, %v1008
      %v1010 = vmax.f32 %v1009, 0.0
      %vm1011 = vcmask 7168
      %1012 = vst.msk [vmem:[%s224] sm:$0xff] %vm1011, %v1010
      %p1013 = scmp.lt.s32.totalorder %s16, 1
      %s1014 = scalar_select %p1013, %s16, 1
      %s1015 = smul.addr %s1014, 8
      %s1016 = scalar_lea.vmem %s5, %s1015
      // Predicated region
      $region41: #{am_transformer.1} parent=39 // pred_check
        %p1017 = pneg %p144
      $region42: #{am_transformer.1} parent=39 // pred_check_branch
        %1019 = sbr.rel (%p1017) target = $region44
      $region43: #{am_transformer.1} parent=39 // pred_region
        _
      $region44: #{am_transformer.1} parent=39 // pred_fallthru
        _
    $region40: #{am_transformer.1} parent=5 // pred_fallthru
      _
    %p1020 = scmp.le.s32.totalorder 2, %s11
    // Predicated region
    $region45: #{am_transformer.1} parent=5 // pred_check
      %p1021 = pneg %p1020
    $region46: #{am_transformer.1} parent=5 // pred_check_branch
      %1023 = sbr.rel (%p1021) target = $region48
    $region47: #{am_transformer.1} parent=5 // pred_region
      %s1024 = ssub.s32 %s11, 2
      // Predicated region
      $region49: #{am_transformer.1} parent=47 // pred_check
        %p1025 = pneg %p150
      $region50: #{am_transformer.1} parent=47 // pred_check_branch
        %1027 = sbr.rel (%p1025) target = $region52
      $region51: #{am_transformer.1} parent=47 // pred_region
        %p1028 = scmp.lt.s32.totalorder %s17, 1
        %s1029 = scalar_select %p1028, %s17, 1
        %s1030 = smul.addr %s1029, 8
        %s1031 = scalar_lea.vmem %s5, %s1030
      $region52: #{am_transformer.1} parent=47 // pred_fallthru
        _
    $region48: #{am_transformer.1} parent=5 // pred_fallthru
      _
  $region6: #{am_transformer.1} parent=0 // loop_footer
    %s15 = sadd.s32 1, %s11
  $region7: #{am_transformer.1} parent=0 // loop_footer_branch
    %10 = sbr.rel target = $region3
  $region8: #{am_transformer.1} parent=0 // loop_exit
    _

</llo_original>
